<compile_context>
chip_gen: v7x
topology: tpu7x:2x2x1
jax: 0.10.0
libtpu: 0.0.40
codegen_flags: <defaults>
</compile_context>

<pallas_src>
import jax
import jax.numpy as jnp
from jax.experimental import pallas as pl
from jax.experimental.pallas import tpu as pltpu

DEPTH = 3        # matches Recognition(depth=3)
_SUBLANE = 8     # TPU sublane width for f32 (second-to-last dim)


def _round_up(n, m):
    return ((n + m - 1) // m) * m


def recognition_kernel(x_ref, w_ref, b_ref, wf_ref, bf_ref, o_ref):
    """One batch tile: x (TB, D_in) -> o (TB, D_out). Weights are VMEM-resident."""
    x = x_ref[...]                                    # (TB, D_in)   f32
    w = w_ref[...]                                    # (D_in, D_in) f32 shared layer
    # Hoist the shared-bias broadcast out of the unrolled depth loop
    # (JAX does not CSE broadcast_in_dim).
    b = jnp.broadcast_to(b_ref[...], x.shape)         # (TB, D_in)
    # (depth - 1) applications of the SAME shared Linear + ReLU (as in PyTorch,
    # which reuses self.linear every time).
    for _ in range(DEPTH - 1):
        x = jnp.maximum(
            jnp.dot(x, w, preferred_element_type=jnp.float32) + b, 0.0)
    # Final projection + sigmoid (narrow N=D_out output; lane-masked store is
    # cheaper than the 16x extra HBM writeback a 128-lane pad would cost).
    y = jnp.dot(x, wf_ref[...], preferred_element_type=jnp.float32) + bf_ref[...]
    o_ref[...] = jax.nn.sigmoid(y)


def recognition_forward(x, w_shared, b_shared, w_final, b_final, *, block_b=1024):
    """x: (B, D_in); w_shared: (D_in, D_in); w_final: (D_in, D_out).
    Biases are (1, D) rows. Returns (B, D_out) f32."""
    B, D_in = x.shape
    D_out = w_final.shape[1]
    f32 = jnp.float32

    # Batch tile: multiple of the sublane width, capped at ~half the batch so
    # the grid has >= 2 steps (uses both TensorCores on v7x) when B allows,
    # and at block_b (multiple of 256 -> fills the v6e/v7x MXU M dimension).
    half = _round_up(-(-B // 2), _SUBLANE)
    TB = max(_SUBLANE, min(block_b, half))
    Bp = _round_up(B, TB)

    xp = x.astype(f32)
    if Bp != B:
        # Only the batch axis is (cheaply) padded; feature dims stay narrow.
        xp = jnp.zeros((Bp, D_in), f32).at[:B].set(xp)

    flops = 2 * Bp * D_in * ((DEPTH - 1) * D_in + D_out)
    bytes_accessed = 4 * (Bp * D_in + D_in * D_in + D_in
                          + D_in * D_out + D_out + Bp * D_out)

    out = pl.pallas_call(
        recognition_kernel,
        out_shape=jax.ShapeDtypeStruct((Bp, D_out), f32),
        grid=(Bp // TB,),
        in_specs=[
            # x: streamed per batch tile; last dim == full array dim (OK per
            # the (8,128) rule), TB is a multiple of 8.
            pl.BlockSpec((TB, D_in), lambda i: (i, 0)),
            # Constant-index blocks: fetched once, stay VMEM-resident. Default
            # double-buffering costs only a few KiB here -- accepted.
            pl.BlockSpec((D_in, D_in), lambda i: (0, 0)),    # shared W
            pl.BlockSpec((1, D_in), lambda i: (0, 0)),       # shared b
            pl.BlockSpec((D_in, D_out), lambda i: (0, 0)),   # final W
            pl.BlockSpec((1, D_out), lambda i: (0, 0)),      # final b
        ],
        out_specs=pl.BlockSpec((TB, D_out), lambda i: (i, 0)),
        compiler_params=pltpu.CompilerParams(
            dimension_semantics=("parallel",),           # shards grid over TCs on v7x
            vmem_limit_bytes=32 * 1024 * 1024,           # safe on v5e/v6e/v7x
        ),
        cost_estimate=pl.CostEstimate(
            flops=flops,
            transcendentals=2 * Bp * D_out,              # sigmoid ~ exp + recip
            bytes_accessed=bytes_accessed,
        ),
    )(xp, w_shared.astype(f32), b_shared.astype(f32),
      w_final.astype(f32), b_final.astype(f32))

    return out[:B] if Bp != B else out


def _reference(x, w_shared, b_shared, w_final, b_final):
    # Pure-JAX reference of the same forward pass.
    for _ in range(DEPTH - 1):
        x = jnp.maximum(x @ w_shared + b_shared, 0.0)
    return jax.nn.sigmoid(x @ w_final + b_final)


if __name__ == "__main__":
    # Small shapes consistent with the module: dim_input=32, dim_output=8.
    B, D_IN, D_OUT = 8, 32, 8

    key = jax.random.PRNGKey(0)
    kx, kw, kb, kwf, kbf = jax.random.split(key, 5)

    x = jax.random.normal(kx, (B, D_IN), dtype=jnp.float32)

    # Deterministic init (mimic nn.Linear's uniform(-1/sqrt(in), 1/sqrt(in))),
    # stored in (in, out) layout == PyTorch weight.T
    bound = 1.0 / jnp.sqrt(jnp.float32(D_IN))
    w_shared = jax.random.uniform(kw, (D_IN, D_IN), jnp.float32, -bound, bound)
    b_shared = jax.random.uniform(kb, (1, D_IN), jnp.float32, -bound, bound)
    w_final = jax.random.uniform(kwf, (D_IN, D_OUT), jnp.float32, -bound, bound)
    b_final = jax.random.uniform(kbf, (1, D_OUT), jnp.float32, -bound, bound)

    fwd = jax.jit(recognition_forward)
    y = jax.block_until_ready(fwd(x, w_shared, b_shared, w_final, b_final))

    y_ref = _reference(x, w_shared, b_shared, w_final, b_final)
    assert y.shape == (B, D_OUT)
    assert jnp.allclose(y, y_ref, atol=1e-5, rtol=1e-5), float(
        jnp.max(jnp.abs(y - y_ref)))

    print("KERNEL_OK")
</pallas_src>

<mosaic_0001>
module attributes {stable_mosaic.version = 11 : i64} {
  func.func @recognition_kernel(%arg0: i32, %arg1: memref<8x32xf32, #tpu.memory_space<vmem>>, %arg2: memref<32x32xf32, #tpu.memory_space<vmem>>, %arg3: memref<1x32xf32, #tpu.memory_space<vmem>>, %arg4: memref<32x8xf32, #tpu.memory_space<vmem>>, %arg5: memref<1x8xf32, #tpu.memory_space<vmem>>, %arg6: memref<8x8xf32, #tpu.memory_space<vmem>>) attributes {dimension_semantics = [#tpu.dimension_semantics<parallel>], iteration_bounds = array<i64: 1>, scalar_prefetch = 0 : i64, scratch_operands = 0 : i64, tpu.core_type = #tpu.core_type<tc>, window_params = [{transform_indices = @transform_0, window_bounds = array<i64: 8, 32>}, {pipeline_mode = #tpu.pipeline_mode<synchronous>, transform_indices = @transform_1, window_bounds = array<i64: 32, 32>}, {pipeline_mode = #tpu.pipeline_mode<synchronous>, transform_indices = @transform_2, window_bounds = array<i64: 1, 32>}, {pipeline_mode = #tpu.pipeline_mode<synchronous>, transform_indices = @transform_3, window_bounds = array<i64: 32, 8>}, {pipeline_mode = #tpu.pipeline_mode<synchronous>, transform_indices = @transform_4, window_bounds = array<i64: 1, 8>}, {transform_indices = @transform_5, window_bounds = array<i64: 8, 8>}]} {
    %c0 = arith.constant 0 : index
    %c0_0 = arith.constant 0 : index
    %0 = vector.load %arg1[%c0, %c0_0] : memref<8x32xf32, #tpu.memory_space<vmem>>, vector<8x32xf32>
    %c0_1 = arith.constant 0 : index
    %c0_2 = arith.constant 0 : index
    %1 = vector.load %arg2[%c0_1, %c0_2] : memref<32x32xf32, #tpu.memory_space<vmem>>, vector<32x32xf32>
    %c0_3 = arith.constant 0 : index
    %c0_4 = arith.constant 0 : index
    %2 = vector.load %arg3[%c0_3, %c0_4] : memref<1x32xf32, #tpu.memory_space<vmem>>, vector<1x32xf32>
    %3 = vector.shape_cast %2 : vector<1x32xf32> to vector<1x32xf32>
    %4 = vector.broadcast %3 : vector<1x32xf32> to vector<8x32xf32>
    %cst = arith.constant dense<0.000000e+00> : vector<8x32xf32>
    %5 = tpu.matmul %0, %1, %cst {dimension_numbers = #tpu.dot_dimension_numbers<[1], [0], [0], [1], [0, 0, 1, 1], [], []>} : vector<8x32xf32>, vector<32x32xf32>, vector<8x32xf32> -> vector<8x32xf32>
    %6 = arith.addf %5, %4 : vector<8x32xf32>
    %cst_5 = arith.constant 0.000000e+00 : f32
    %7 = vector.broadcast %cst_5 : f32 to vector<8x32xf32>
    %8 = arith.maximumf %6, %7 : vector<8x32xf32>
    %cst_6 = arith.constant dense<0.000000e+00> : vector<8x32xf32>
    %9 = tpu.matmul %8, %1, %cst_6 {dimension_numbers = #tpu.dot_dimension_numbers<[1], [0], [0], [1], [0, 0, 1, 1], [], []>} : vector<8x32xf32>, vector<32x32xf32>, vector<8x32xf32> -> vector<8x32xf32>
    %10 = arith.addf %9, %4 : vector<8x32xf32>
    %cst_7 = arith.constant 0.000000e+00 : f32
    %11 = vector.broadcast %cst_7 : f32 to vector<8x32xf32>
    %12 = arith.maximumf %10, %11 : vector<8x32xf32>
    %c0_8 = arith.constant 0 : index
    %c0_9 = arith.constant 0 : index
    %13 = vector.load %arg4[%c0_8, %c0_9] : memref<32x8xf32, #tpu.memory_space<vmem>>, vector<32x8xf32>
    %cst_10 = arith.constant dense<0.000000e+00> : vector<8x8xf32>
    %14 = tpu.matmul %12, %13, %cst_10 {dimension_numbers = #tpu.dot_dimension_numbers<[1], [0], [0], [1], [0, 0, 1, 1], [], []>} : vector<8x32xf32>, vector<32x8xf32>, vector<8x8xf32> -> vector<8x8xf32>
    %c0_11 = arith.constant 0 : index
    %c0_12 = arith.constant 0 : index
    %15 = vector.load %arg5[%c0_11, %c0_12] : memref<1x8xf32, #tpu.memory_space<vmem>>, vector<1x8xf32>
    %16 = vector.broadcast %15 : vector<1x8xf32> to vector<8x8xf32>
    %17 = arith.addf %14, %16 : vector<8x8xf32>
    %18 = arith.negf %17 : vector<8x8xf32>
    %19 = math.exp %18 : vector<8x8xf32>
    %cst_13 = arith.constant 1.000000e+00 : f32
    %20 = vector.broadcast %cst_13 : f32 to vector<8x8xf32>
    %21 = arith.addf %20, %19 : vector<8x8xf32>
    %22 = arith.divf %20, %21 : vector<8x8xf32>
    %c0_14 = arith.constant 0 : index
    %c0_15 = arith.constant 0 : index
    %23 = vector.load %arg6[%c0_14, %c0_15] : memref<8x8xf32, #tpu.memory_space<vmem>>, vector<8x8xf32>
    tpu.vector_store %arg6[%c0_14, %c0_15], %22 {strides = array<i32>} : memref<8x8xf32, #tpu.memory_space<vmem>>, vector<8x8xf32>,
    return
  }
  func.func @transform_0(%arg0: i32) -> (i32, i32) {
    %c0_i32 = arith.constant 0 : i32
    %c0_i32_0 = arith.constant 0 : i32
    return %arg0, %c0_i32 : i32, i32
  }
  func.func @transform_1(%arg0: i32) -> (i32, i32) {
    %c0_i32 = arith.constant 0 : i32
    %c0_i32_0 = arith.constant 0 : i32
    %c0_i32_1 = arith.constant 0 : i32
    return %c0_i32, %c0_i32_0 : i32, i32
  }
  func.func @transform_2(%arg0: i32) -> (i32, i32) {
    %c0_i32 = arith.constant 0 : i32
    %c0_i32_0 = arith.constant 0 : i32
    %c0_i32_1 = arith.constant 0 : i32
    return %c0_i32, %c0_i32_0 : i32, i32
  }
  func.func @transform_3(%arg0: i32) -> (i32, i32) {
    %c0_i32 = arith.constant 0 : i32
    %c0_i32_0 = arith.constant 0 : i32
    %c0_i32_1 = arith.constant 0 : i32
    return %c0_i32, %c0_i32_0 : i32, i32
  }
  func.func @transform_4(%arg0: i32) -> (i32, i32) {
    %c0_i32 = arith.constant 0 : i32
    %c0_i32_0 = arith.constant 0 : i32
    %c0_i32_1 = arith.constant 0 : i32
    return %c0_i32, %c0_i32_0 : i32, i32
  }
  func.func @transform_5(%arg0: i32) -> (i32, i32) {
    %c0_i32 = arith.constant 0 : i32
    %c0_i32_0 = arith.constant 0 : i32
    return %arg0, %c0_i32 : i32, i32
  }
}

</mosaic_0001>

<llo_original>
// kernel: recognition_forward.1
$region0: #{recognition_forward.1}
  #allocation0 [shape = 'u32[]', space=smem, size = 0x4, offset = 0x4, fixed_abs, tag = 'smem constant byte address 0x4 - core index']
  #allocation1 [shape = 'u32[144,128]{1,0:T(1,128)}', space=vmem, size = 0x12000, scoped, tag = 'internal scratch']
  %s0 = inlined_call_operand.vmem [shape: f32[8,32], index: 0, kind: input, shape index: {}]
  %s1 = inlined_call_operand.vmem [shape: f32[32,32], index: 1, kind: input, shape index: {}]
  %s2 = inlined_call_operand.vmem [shape: f32[1,32], index: 2, kind: input, shape index: {}]
  %s3 = inlined_call_operand.vmem [shape: f32[32,8], index: 3, kind: input, shape index: {}]
  %s4 = inlined_call_operand.vmem [shape: f32[1,8], index: 4, kind: input, shape index: {}]
  %s5 = inlined_call_operand.hbm [shape: f32[8,8], index: 5, kind: output, shape index: {}]
  %s6 = sld [smem:[#allocation0]]
  $region30: #{recognition_forward.1} parent=0
    _
  %s8 = ssub.s32 1, %s6
  %s9 = scalar_select 0, %s8, %s6
  $region1: #{recognition_forward.1} parent=0
    #allocation2 [shape = 'u8[4096]{0}', space=vmem, size = 0x1000, scoped, tag = 'output window, operand 0, single buffered']
    #allocation3 [shape = 's32[1]{0}', space=sflag, size = 0x4, scoped, tag = 'scoped memory for recognition_forward.1']
    %10 = vsyncpa [#allocation3], 0
    // Predicated region
    $region2: #{recognition_forward.1} parent=1 // pred_check
      _
    $region3: #{recognition_forward.1} parent=1 // pred_check_branch
      %12 = sbr.rel (0) target = $region5
    $region4: #{recognition_forward.1} parent=1 // pred_region
      _
    $region5: #{recognition_forward.1} parent=1 // pred_fallthru
      _
    // Predicated region
    $region6: #{recognition_forward.1} parent=1 // pred_check
      _
    $region7: #{recognition_forward.1} parent=1 // pred_check_branch
      %14 = sbr.rel (0) target = $region9
    $region8: #{recognition_forward.1} parent=1 // pred_region
      _
    $region9: #{recognition_forward.1} parent=1 // pred_fallthru
      _
    // Predicated region
    $region10: #{recognition_forward.1} parent=1 // pred_check
      _
    $region11: #{recognition_forward.1} parent=1 // pred_check_branch
      %16 = sbr.rel (0) target = $region13
    $region12: #{recognition_forward.1} parent=1 // pred_region
      _
    $region13: #{recognition_forward.1} parent=1 // pred_fallthru
      _
    // Predicated region
    $region14: #{recognition_forward.1} parent=1 // pred_check
      _
    $region15: #{recognition_forward.1} parent=1 // pred_check_branch
      %18 = sbr.rel (0) target = $region17
    $region16: #{recognition_forward.1} parent=1 // pred_region
      _
    $region17: #{recognition_forward.1} parent=1 // pred_fallthru
      _
    // Predicated region
    $region18: #{recognition_forward.1} parent=1 // pred_check
      _
    $region19: #{recognition_forward.1} parent=1 // pred_check_branch
      %20 = sbr.rel (0) target = $region21
    $region20: #{recognition_forward.1} parent=1 // pred_region
      _
    $region21: #{recognition_forward.1} parent=1 // pred_fallthru
      _
    %v21 = vld [vmem:[%s0] sm:$0xff]
    %v22 = vld [vmem:[%s1] sm:$0xff]
    %v23 = vld [vmem:[%s1 + $0x8] sm:$0xff]
    %v24 = vld [vmem:[%s1 + $0x10] sm:$0xff]
    %v25 = vld [vmem:[%s1 + $0x18] sm:$0xff]
    %v26 = vld [vmem:[%s2] sm:$0x1]
    %v28 = vlaneseq
    %v29 = vshrl.u32 %v28, 7
    %v30 = vsub.s32 0, %v29
    %v31 = vrot.slane %v26, %v30
    %vm33 = vcmask 261120
    %v35 = vsel %vm33, %v21, 0
    %37 = vmatprep.subr.mxu0 0.0
    %38 = vmatpush1.msra.mxu0 %v22
    %39 = vmatprep.subr.mxu0 0.0
    %40 = vmatpush1.msra.mxu0 %v23
    %41 = vmatprep.subr.mxu0 0.0
    %42 = vmatpush1.msra.mxu0 %v24
    %43 = vmatprep.subr.mxu0 0.0
    %44 = vmatpush1.msra.mxu0 %v25
    %45 = vmatprep.subr.mxu0 0.0
    %46 = vmatpush1.msra.mxu0 0.0
    %47 = vmatprep.subr.mxu0 0.0
    %48 = vmatpush1.msra.mxu0 0.0
    %49 = vmatprep.subr.mxu0 0.0
    %50 = vmatpush1.msra.mxu0 0.0
    %51 = vmatprep.subr.mxu0 0.0
    %52 = vmatpush1.msra.mxu0 0.0
    %53 = vmatprep.subr.mxu0 0.0
    %54 = vmatpush1.msra.mxu0 0.0
    %55 = vmatprep.subr.mxu0 0.0
    %56 = vmatpush1.msra.mxu0 0.0
    %57 = vmatprep.subr.mxu0 0.0
    %58 = vmatpush1.msra.mxu0 0.0
    %59 = vmatprep.subr.mxu0 0.0
    %60 = vmatpush1.msra.mxu0 0.0
    %61 = vmatprep.subr.mxu0 0.0
    %62 = vmatpush1.msra.mxu0 0.0
    %63 = vmatprep.subr.mxu0 0.0
    %64 = vmatpush1.msra.mxu0 0.0
    %65 = vmatprep.subr.mxu0 0.0
    %66 = vmatpush1.msra.mxu0 0.0
    %67 = vmatprep.subr.mxu0 0.0
    %68 = vmatpush1.msra.mxu0 0.0
    %69 = vmatprep.subr.mxu0 0.0
    %70 = vmatpush1.msra.mxu0 0.0
    %71 = vmatprep.subr.mxu0 0.0
    %72 = vmatpush1.msra.mxu0 0.0
    %73 = vmatprep.subr.mxu0 0.0
    %74 = vmatpush1.msra.mxu0 0.0
    %75 = vmatprep.subr.mxu0 0.0
    %76 = vmatpush1.msra.mxu0 0.0
    %77 = vmatprep.subr.mxu0 0.0
    %78 = vmatpush1.msra.mxu0 0.0
    %79 = vmatprep.subr.mxu0 0.0
    %80 = vmatpush1.msra.mxu0 0.0
    %81 = vmatprep.subr.mxu0 0.0
    %82 = vmatpush1.msra.mxu0 0.0
    %83 = vmatprep.subr.mxu0 0.0
    %84 = vmatpush1.msra.mxu0 0.0
    %85 = vmatprep.subr.mxu0 0.0
    %86 = vmatpush1.msra.mxu0 0.0
    %87 = vmatprep.subr.mxu0 0.0
    %88 = vmatpush1.msra.mxu0 0.0
    %89 = vmatprep.subr.mxu0 0.0
    %90 = vmatpush1.msra.mxu0 0.0
    %91 = vmatprep.subr.mxu0 0.0
    %92 = vmatpush1.msra.mxu0 0.0
    %93 = vmatprep.subr.mxu0 0.0
    %94 = vmatpush1.msra.mxu0 0.0
    %95 = vmatprep.subr.mxu0 0.0
    %96 = vmatpush1.msra.mxu0 0.0
    %97 = vmatprep.subr.mxu0 0.0
    %98 = vmatpush1.msra.mxu0 0.0
    %99 = vmatprep.subr.mxu0 0.0
    %100 = vmatpush1.msra.mxu0 0.0
    %101 = vmatprep.mubr.f32.mxu0 0.0
    %102 = vmatmul.mubr.f32.gmra.mrb[0].mxu0 %v35
    %v103 = vpop.f32.mrb[0].mxu0
    %v104 = vadd.f32 %v31, %v103
    %v105 = vpop.f32.mrb[0].mxu0
    %106 = vdwg.mxu0
    %v107 = vmax.f32 %v104, 0.0
    %v109 = vsel %vm33, %v107, 0
    %111 = vmatprep.subr.mxu0 0.0
    %112 = vmatpush1.msra.mxu0 %v22
    %113 = vmatprep.subr.mxu0 0.0
    %114 = vmatpush1.msra.mxu0 %v23
    %115 = vmatprep.subr.mxu0 0.0
    %116 = vmatpush1.msra.mxu0 %v24
    %117 = vmatprep.subr.mxu0 0.0
    %118 = vmatpush1.msra.mxu0 %v25
    %119 = vmatprep.subr.mxu0 0.0
    %120 = vmatpush1.msra.mxu0 0.0
    %121 = vmatprep.subr.mxu0 0.0
    %122 = vmatpush1.msra.mxu0 0.0
    %123 = vmatprep.subr.mxu0 0.0
    %124 = vmatpush1.msra.mxu0 0.0
    %125 = vmatprep.subr.mxu0 0.0
    %126 = vmatpush1.msra.mxu0 0.0
    %127 = vmatprep.subr.mxu0 0.0
    %128 = vmatpush1.msra.mxu0 0.0
    %129 = vmatprep.subr.mxu0 0.0
    %130 = vmatpush1.msra.mxu0 0.0
    %131 = vmatprep.subr.mxu0 0.0
    %132 = vmatpush1.msra.mxu0 0.0
    %133 = vmatprep.subr.mxu0 0.0
    %134 = vmatpush1.msra.mxu0 0.0
    %135 = vmatprep.subr.mxu0 0.0
    %136 = vmatpush1.msra.mxu0 0.0
    %137 = vmatprep.subr.mxu0 0.0
    %138 = vmatpush1.msra.mxu0 0.0
    %139 = vmatprep.subr.mxu0 0.0
    %140 = vmatpush1.msra.mxu0 0.0
    %141 = vmatprep.subr.mxu0 0.0
    %142 = vmatpush1.msra.mxu0 0.0
    %143 = vmatprep.subr.mxu0 0.0
    %144 = vmatpush1.msra.mxu0 0.0
    %145 = vmatprep.subr.mxu0 0.0
    %146 = vmatpush1.msra.mxu0 0.0
    %147 = vmatprep.subr.mxu0 0.0
    %148 = vmatpush1.msra.mxu0 0.0
    %149 = vmatprep.subr.mxu0 0.0
    %150 = vmatpush1.msra.mxu0 0.0
    %151 = vmatprep.subr.mxu0 0.0
    %152 = vmatpush1.msra.mxu0 0.0
    %153 = vmatprep.subr.mxu0 0.0
    %154 = vmatpush1.msra.mxu0 0.0
    %155 = vmatprep.subr.mxu0 0.0
    %156 = vmatpush1.msra.mxu0 0.0
    %157 = vmatprep.subr.mxu0 0.0
    %158 = vmatpush1.msra.mxu0 0.0
    %159 = vmatprep.subr.mxu0 0.0
    %160 = vmatpush1.msra.mxu0 0.0
    %161 = vmatprep.subr.mxu0 0.0
    %162 = vmatpush1.msra.mxu0 0.0
    %163 = vmatprep.subr.mxu0 0.0
    %164 = vmatpush1.msra.mxu0 0.0
    %165 = vmatprep.subr.mxu0 0.0
    %166 = vmatpush1.msra.mxu0 0.0
    %167 = vmatprep.subr.mxu0 0.0
    %168 = vmatpush1.msra.mxu0 0.0
    %169 = vmatprep.subr.mxu0 0.0
    %170 = vmatpush1.msra.mxu0 0.0
    %171 = vmatprep.subr.mxu0 0.0
    %172 = vmatpush1.msra.mxu0 0.0
    %173 = vmatprep.subr.mxu0 0.0
    %174 = vmatpush1.msra.mxu0 0.0
    %175 = vmatprep.mubr.f32.mxu0 0.0
    %176 = vmatmul.mubr.f32.gmra.mrb[0].mxu0 %v109
    %v177 = vpop.f32.mrb[0].mxu0
    %v178 = vadd.f32 %v31, %v177
    %v179 = vpop.f32.mrb[0].mxu0
    %180 = vdwg.mxu0
    %v181 = vmax.f32 %v178, 0.0
    %v182 = vld [vmem:[%s3] sm:$0xff]
    %v183 = vld [vmem:[%s3 + $0x8] sm:$0xff]
    %v184 = vld [vmem:[%s3 + $0x10] sm:$0xff]
    %v185 = vld [vmem:[%s3 + $0x18] sm:$0xff]
    %v186 = vld [vmem:[%s4] sm:$0x1]
    %v188 = vlaneseq
    %v189 = vshrl.u32 %v188, 7
    %v190 = vsub.s32 0, %v189
    %v191 = vrot.slane %v186, %v190
    %v194 = vsel %vm33, %v181, 0
    %196 = vmatprep.subr.mxu0 0.0
    %197 = vmatpush1.msra.mxu0 %v182
    %198 = vmatprep.subr.mxu0 0.0
    %199 = vmatpush1.msra.mxu0 %v183
    %200 = vmatprep.subr.mxu0 0.0
    %201 = vmatpush1.msra.mxu0 %v184
    %202 = vmatprep.subr.mxu0 0.0
    %203 = vmatpush1.msra.mxu0 %v185
    %204 = vmatprep.subr.mxu0 0.0
    %205 = vmatpush1.msra.mxu0 0.0
    %206 = vmatprep.subr.mxu0 0.0
    %207 = vmatpush1.msra.mxu0 0.0
    %208 = vmatprep.subr.mxu0 0.0
    %209 = vmatpush1.msra.mxu0 0.0
    %210 = vmatprep.subr.mxu0 0.0
    %211 = vmatpush1.msra.mxu0 0.0
    %212 = vmatprep.subr.mxu0 0.0
    %213 = vmatpush1.msra.mxu0 0.0
    %214 = vmatprep.subr.mxu0 0.0
    %215 = vmatpush1.msra.mxu0 0.0
    %216 = vmatprep.subr.mxu0 0.0
    %217 = vmatpush1.msra.mxu0 0.0
    %218 = vmatprep.subr.mxu0 0.0
    %219 = vmatpush1.msra.mxu0 0.0
    %220 = vmatprep.subr.mxu0 0.0
    %221 = vmatpush1.msra.mxu0 0.0
    %222 = vmatprep.subr.mxu0 0.0
    %223 = vmatpush1.msra.mxu0 0.0
    %224 = vmatprep.subr.mxu0 0.0
    %225 = vmatpush1.msra.mxu0 0.0
    %226 = vmatprep.subr.mxu0 0.0
    %227 = vmatpush1.msra.mxu0 0.0
    %228 = vmatprep.subr.mxu0 0.0
    %229 = vmatpush1.msra.mxu0 0.0
    %230 = vmatprep.subr.mxu0 0.0
    %231 = vmatpush1.msra.mxu0 0.0
    %232 = vmatprep.subr.mxu0 0.0
    %233 = vmatpush1.msra.mxu0 0.0
    %234 = vmatprep.subr.mxu0 0.0
    %235 = vmatpush1.msra.mxu0 0.0
    %236 = vmatprep.subr.mxu0 0.0
    %237 = vmatpush1.msra.mxu0 0.0
    %238 = vmatprep.subr.mxu0 0.0
    %239 = vmatpush1.msra.mxu0 0.0
    %240 = vmatprep.subr.mxu0 0.0
    %241 = vmatpush1.msra.mxu0 0.0
    %242 = vmatprep.subr.mxu0 0.0
    %243 = vmatpush1.msra.mxu0 0.0
    %244 = vmatprep.subr.mxu0 0.0
    %245 = vmatpush1.msra.mxu0 0.0
    %246 = vmatprep.subr.mxu0 0.0
    %247 = vmatpush1.msra.mxu0 0.0
    %248 = vmatprep.subr.mxu0 0.0
    %249 = vmatpush1.msra.mxu0 0.0
    %250 = vmatprep.subr.mxu0 0.0
    %251 = vmatpush1.msra.mxu0 0.0
    %252 = vmatprep.subr.mxu0 0.0
    %253 = vmatpush1.msra.mxu0 0.0
    %254 = vmatprep.subr.mxu0 0.0
    %255 = vmatpush1.msra.mxu0 0.0
    %256 = vmatprep.subr.mxu0 0.0
    %257 = vmatpush1.msra.mxu0 0.0
    %258 = vmatprep.subr.mxu0 0.0
    %259 = vmatpush1.msra.mxu0 0.0
    %260 = vmatprep.mubr.f32.mxu0 0.0
    %261 = vmatmul.mubr.f32.gmra.mrb[0].mxu0 %v194
    %v262 = vpop.f32.mrb[0].mxu0
    %v263 = vadd.f32 %v191, %v262
    %v264 = vpop.f32.mrb[0].mxu0
    %265 = vdwg.mxu0
    %v266 = vxor.u32 %v263, 2147483648
    %v267 = vmul.f32 %v266, 1.442695
    %v268 = vpow.pop %v267
    %v269 = vadd.f32 %v268, 1.0
    %v270 = vrcp.pop %v269
    %v271 = vmul.f32 1.0, %v270
    %vm272 = vcmask 64512
    %273 = vst.msk [vmem:[#allocation2] sm:$0xff] %vm272, %v271
    // Predicated region
    $region22: #{recognition_forward.1} parent=1 // pred_check
      _
    $region23: #{recognition_forward.1} parent=1 // pred_check_branch
      %275 = sbr.rel (0) target = $region25
    $region24: #{recognition_forward.1} parent=1 // pred_region
      %s277 = ssub.s32 128, 128
      %278 = vsyncadd [#allocation3], %s277
      %s280 = sshll.u32 [#allocation2], 4
      %s281 = int_to_ptr.vmem [resolvable:$true] %s280
      %283 = dma.vmem_to_hbm [thread:$0]  %s281, 128, %s5, [#allocation3]
    $region25: #{recognition_forward.1} parent=1 // pred_fallthru
      _
    // Predicated region
    $region26: #{recognition_forward.1} parent=1 // pred_check
      _
    $region27: #{recognition_forward.1} parent=1 // pred_check_branch
      %285 = sbr.rel (0) target = $region29
    $region28: #{recognition_forward.1} parent=1 // pred_region
      %286 = dma.done [#allocation3], 128
    $region29: #{recognition_forward.1} parent=1 // pred_fallthru
      _
    %287 = vsyncpa [#allocation3], 1

</llo_original>
